<compile_context>
chip_gen: v7x
topology: tpu7x:2x2x1
jax: 0.10.0
libtpu: 0.0.40
codegen_flags: <defaults>
</compile_context>

<pallas_src>
import math
import functools

import jax
import jax.numpy as jnp
from jax.experimental import pallas as pl
from jax.experimental.pallas import tpu as pltpu

HID = 128          # hidden width of affine1
HID_AUG = 136      # 128 + 1 (ones/bias carrier) padded up to a multiple of 8
KIN_AUG = 5        # 4 input features + 1 ones row


def _round_up(n, m):
    return ((n + m - 1) // m) * m


def _choose_tile(B, tile_b):
    """Pick a lane-dense batch tile (multiple of 128)."""
    Bp0 = _round_up(max(B, 1), 128)
    if Bp0 <= 128:
        return 128                              # tiny RL batch: one tile
    # >=2 tiles lets the parallel grid axis feed both v7x TensorCores;
    # cap tile size at tile_b (per-step overhead ~0.35us, VMEM is tiny here).
    n_tiles = max(2, -(-Bp0 // tile_b))
    return _round_up(-(-Bp0 // n_tiles), 128)


def policy_kernel(xa_ref, w1_ref, wh_ref, out_ref):
    # First layer + bias, broadcast-free single MXU pass:
    #   (HID_AUG, 5) @ (5, TB) -> (HID_AUG, TB)
    h = jnp.dot(w1_ref[...], xa_ref[...], preferred_element_type=jnp.float32)
    h = jnp.maximum(h, 0.0)          # rows 0..127: relu(x@W1+b1)^T
                                     # row 128: relu(1) = 1 (bias carrier)
                                     # rows 129..135: relu(0) = 0 (padding)

    # Fused action + value head (+ biases via column 128), one MXU pass:
    #   (3, HID_AUG) @ (HID_AUG, TB) -> (3, TB)
    hv = jnp.dot(wh_ref[...], h, preferred_element_type=jnp.float32)

    l0 = hv[0:1, :]                  # action logit 0, lane-dense (1, TB)
    l1 = hv[1:2, :]                  # action logit 1
    val = hv[2:3, :]                 # state value

    # Stable 2-class softmax, fully elementwise on lane-dense rows.
    m = jnp.maximum(l0, l1)
    e0 = jnp.exp(l0 - m)
    e1 = jnp.exp(l1 - m)
    inv = 1.0 / (e0 + e1)            # exact divide (keeps 1e-5 agreement)

    # Direct row writes into the resident output tile (no lane concat).
    out_ref[0:1, :] = e0 * inv
    out_ref[1:2, :] = e1 * inv
    out_ref[2:3, :] = val


def fuse_params(params):
    """Precompute augmented/fused kernel weights (call once, outside jit loop)."""
    w1, b1, wa, ba, wv, bv = params
    # W1_aug: rows 0..127 = [W1^T | b1^T]; row 128 = ones carrier; rest zero.
    w1_aug = jnp.zeros((HID_AUG, KIN_AUG), jnp.float32)
    w1_aug = w1_aug.at[:HID, :4].set(w1.T)
    w1_aug = w1_aug.at[:HID, 4].set(b1[0])
    w1_aug = w1_aug.at[HID, 4].set(1.0)
    # Wh_aug: cols 0..127 = [Wa^T ; Wv^T]; col 128 = [ba^T ; bv^T]; rest zero.
    wh_aug = jnp.zeros((3, HID_AUG), jnp.float32)
    wh_aug = wh_aug.at[0:2, :HID].set(wa.T)
    wh_aug = wh_aug.at[2, :HID].set(wv[:, 0])
    wh_aug = wh_aug.at[0:2, HID].set(ba[0])
    wh_aug = wh_aug.at[2, HID].set(bv[0, 0])
    return w1_aug, wh_aug


@functools.partial(jax.jit, static_argnames=("tile_b",))
def policy_forward(x, fused_params, tile_b=2048):
    """x: (B, 4) float32.  Returns (action_prob (B, 2), state_values (B, 1))."""
    w1_aug, wh_aug = fused_params
    B = x.shape[0]

    TB = _choose_tile(B, tile_b)
    Bp = _round_up(B, TB)
    xp = x if Bp == B else jnp.pad(x, ((0, Bp - B), (0, 0)))
    # (5, Bp): x^T with an appended ones row (bias carrier). Padded columns
    # produce finite garbage that is sliced away below.
    xa = jnp.concatenate([xp.T, jnp.ones((1, Bp), jnp.float32)], axis=0)

    grid = (Bp // TB,)

    flops = 2 * Bp * (HID_AUG * KIN_AUG + 3 * HID_AUG) + Bp * HID_AUG
    bytes_accessed = 4 * (KIN_AUG * Bp + 3 * Bp + w1_aug.size + wh_aug.size)

    out = pl.pallas_call(
        policy_kernel,
        out_shape=jax.ShapeDtypeStruct((3, Bp), jnp.float32),
        grid=grid,
        in_specs=[
            pl.BlockSpec((KIN_AUG, TB), lambda i: (0, i)),   # x_aug: lane-tiled batch
            pl.BlockSpec((HID_AUG, KIN_AUG), lambda i: (0, 0)),  # W1_aug resident
            pl.BlockSpec((3, HID_AUG), lambda i: (0, 0)),        # Wh_aug resident
        ],
        out_specs=pl.BlockSpec((3, TB), lambda i: (0, i)),   # lane-dense output
        compiler_params=pltpu.CompilerParams(
            dimension_semantics=("parallel",)),
        cost_estimate=pl.CostEstimate(
            flops=flops, transcendentals=2 * Bp, bytes_accessed=bytes_accessed),
    )(xa, w1_aug, wh_aug)

    probs = out[0:2, :B].T       # (B, 2)
    values = out[2:3, :B].T      # (B, 1)
    return probs, values


def init_params(key):
    """Deterministic init mirroring PyTorch nn.Linear default:
    U(-1/sqrt(fan_in), 1/sqrt(fan_in)).  Weights stored as (in, out)."""
    def linear(key, fan_in, fan_out):
        kw, kb = jax.random.split(key)
        bound = 1.0 / math.sqrt(fan_in)
        w = jax.random.uniform(kw, (fan_in, fan_out), jnp.float32, -bound, bound)
        b = jax.random.uniform(kb, (1, fan_out), jnp.float32, -bound, bound)
        return w, b

    k1, k2, k3 = jax.random.split(key, 3)
    w1, b1 = linear(k1, 4, 128)     # affine1
    wa, ba = linear(k2, 128, 2)     # action_head
    wv, bv = linear(k3, 128, 1)     # value_head
    return w1, b1, wa, ba, wv, bv


def policy_forward_ref(x, params):
    w1, b1, wa, ba, wv, bv = params
    h = jnp.maximum(x @ w1 + b1, 0.0)
    logits = h @ wa + ba
    probs = jax.nn.softmax(logits, axis=-1)
    value = h @ wv + bv
    return probs, value


if __name__ == "__main__":
    key = jax.random.PRNGKey(0)
    kp, kx1, kx2 = jax.random.split(key, 3)

    params = init_params(kp)
    fused = fuse_params(params)      # precomputed once (hoisted out of calls)

    # small RL-style batch (single-tile path)
    B = 2
    x = jax.random.normal(kx1, (B, 4), dtype=jnp.float32)
    probs, values = policy_forward(x, fused)
    jax.block_until_ready((probs, values))

    probs_ref, values_ref = policy_forward_ref(x, params)
    assert probs.shape == (B, 2) and values.shape == (B, 1)
    assert jnp.allclose(probs, probs_ref, atol=1e-5, rtol=1e-5)
    assert jnp.allclose(values, values_ref, atol=1e-5, rtol=1e-5)
    assert jnp.allclose(jnp.sum(probs, axis=-1), 1.0, atol=1e-5)

    # larger batch exercising the multi-tile + padded-tail path
    B2 = 2500
    x2 = jax.random.normal(kx2, (B2, 4), dtype=jnp.float32)
    probs2, values2 = policy_forward(x2, fused)
    jax.block_until_ready((probs2, values2))

    probs2_ref, values2_ref = policy_forward_ref(x2, params)
    assert probs2.shape == (B2, 2) and values2.shape == (B2, 1)
    assert jnp.allclose(probs2, probs2_ref, atol=1e-5, rtol=1e-5)
    assert jnp.allclose(values2, values2_ref, atol=1e-5, rtol=1e-5)
    assert jnp.allclose(jnp.sum(probs2, axis=-1), 1.0, atol=1e-5)

    print("KERNEL_OK")
</pallas_src>

<mosaic_0001>
module attributes {stable_mosaic.version = 11 : i64} {
  func.func @policy_kernel(%arg0: i32, %arg1: memref<5x128xf32, #tpu.memory_space<vmem>>, %arg2: memref<136x5xf32, #tpu.memory_space<vmem>>, %arg3: memref<3x136xf32, #tpu.memory_space<vmem>>, %arg4: memref<3x128xf32, #tpu.memory_space<vmem>>) attributes {dimension_semantics = [#tpu.dimension_semantics<parallel>], iteration_bounds = array<i64: 1>, scalar_prefetch = 0 : i64, scratch_operands = 0 : i64, tpu.core_type = #tpu.core_type<tc>, window_params = [{transform_indices = @transform_0, window_bounds = array<i64: 5, 128>}, {pipeline_mode = #tpu.pipeline_mode<synchronous>, transform_indices = @transform_1, window_bounds = array<i64: 136, 5>}, {pipeline_mode = #tpu.pipeline_mode<synchronous>, transform_indices = @transform_2, window_bounds = array<i64: 3, 136>}, {transform_indices = @transform_3, window_bounds = array<i64: 3, 128>}]} {
    %c0 = arith.constant 0 : index
    %c0_0 = arith.constant 0 : index
    %0 = vector.load %arg2[%c0, %c0_0] : memref<136x5xf32, #tpu.memory_space<vmem>>, vector<136x5xf32>
    %c0_1 = arith.constant 0 : index
    %c0_2 = arith.constant 0 : index
    %1 = vector.load %arg1[%c0_1, %c0_2] : memref<5x128xf32, #tpu.memory_space<vmem>>, vector<5x128xf32>
    %cst = arith.constant dense<0.000000e+00> : vector<136x128xf32>
    %2 = tpu.matmul %0, %1, %cst {dimension_numbers = #tpu.dot_dimension_numbers<[1], [0], [0], [1], [0, 0, 1, 1], [], []>} : vector<136x5xf32>, vector<5x128xf32>, vector<136x128xf32> -> vector<136x128xf32>
    %cst_3 = arith.constant 0.000000e+00 : f32
    %3 = vector.broadcast %cst_3 : f32 to vector<136x128xf32>
    %4 = arith.maximumf %2, %3 : vector<136x128xf32>
    %c0_4 = arith.constant 0 : index
    %c0_5 = arith.constant 0 : index
    %5 = vector.load %arg3[%c0_4, %c0_5] : memref<3x136xf32, #tpu.memory_space<vmem>>, vector<3x136xf32>
    %cst_6 = arith.constant dense<0.000000e+00> : vector<3x128xf32>
    %6 = tpu.matmul %5, %4, %cst_6 {dimension_numbers = #tpu.dot_dimension_numbers<[1], [0], [0], [1], [0, 0, 1, 1], [], []>} : vector<3x136xf32>, vector<136x128xf32>, vector<3x128xf32> -> vector<3x128xf32>
    %7 = vector.extract_strided_slice %6 {offsets = [0, 0], sizes = [1, 128], strides = [1, 1]} : vector<3x128xf32> to vector<1x128xf32>
    %8 = vector.extract_strided_slice %6 {offsets = [1, 0], sizes = [1, 128], strides = [1, 1]} : vector<3x128xf32> to vector<1x128xf32>
    %9 = vector.extract_strided_slice %6 {offsets = [2, 0], sizes = [1, 128], strides = [1, 1]} : vector<3x128xf32> to vector<1x128xf32>
    %10 = arith.maximumf %7, %8 : vector<1x128xf32>
    %11 = arith.subf %7, %10 : vector<1x128xf32>
    %12 = math.exp %11 : vector<1x128xf32>
    %13 = arith.subf %8, %10 : vector<1x128xf32>
    %14 = math.exp %13 : vector<1x128xf32>
    %15 = arith.addf %12, %14 : vector<1x128xf32>
    %cst_7 = arith.constant 1.000000e+00 : f32
    %16 = vector.broadcast %cst_7 : f32 to vector<1x128xf32>
    %17 = arith.divf %16, %15 : vector<1x128xf32>
    %18 = arith.mulf %12, %17 : vector<1x128xf32>
    %c0_8 = arith.constant 0 : index
    %c0_9 = arith.constant 0 : index
    %19 = vector.load %arg4[%c0_8, %c0_9] : memref<3x128xf32, #tpu.memory_space<vmem>>, vector<1x128xf32>
    tpu.vector_store %arg4[%c0_8, %c0_9], %18 {strides = array<i32>} : memref<3x128xf32, #tpu.memory_space<vmem>>, vector<1x128xf32>,
    %20 = arith.mulf %14, %17 : vector<1x128xf32>
    %c1 = arith.constant 1 : index
    %c0_10 = arith.constant 0 : index
    %21 = vector.load %arg4[%c1, %c0_10] : memref<3x128xf32, #tpu.memory_space<vmem>>, vector<1x128xf32>
    tpu.vector_store %arg4[%c1, %c0_10], %20 {strides = array<i32>} : memref<3x128xf32, #tpu.memory_space<vmem>>, vector<1x128xf32>,
    %c2 = arith.constant 2 : index
    %c0_11 = arith.constant 0 : index
    %22 = vector.load %arg4[%c2, %c0_11] : memref<3x128xf32, #tpu.memory_space<vmem>>, vector<1x128xf32>
    tpu.vector_store %arg4[%c2, %c0_11], %9 {strides = array<i32>} : memref<3x128xf32, #tpu.memory_space<vmem>>, vector<1x128xf32>,
    return
  }
  func.func @transform_0(%arg0: i32) -> (i32, i32) {
    %c0_i32 = arith.constant 0 : i32
    %c0_i32_0 = arith.constant 0 : i32
    return %c0_i32, %arg0 : i32, i32
  }
  func.func @transform_1(%arg0: i32) -> (i32, i32) {
    %c0_i32 = arith.constant 0 : i32
    %c0_i32_0 = arith.constant 0 : i32
    %c0_i32_1 = arith.constant 0 : i32
    return %c0_i32, %c0_i32_0 : i32, i32
  }
  func.func @transform_2(%arg0: i32) -> (i32, i32) {
    %c0_i32 = arith.constant 0 : i32
    %c0_i32_0 = arith.constant 0 : i32
    %c0_i32_1 = arith.constant 0 : i32
    return %c0_i32, %c0_i32_0 : i32, i32
  }
  func.func @transform_3(%arg0: i32) -> (i32, i32) {
    %c0_i32 = arith.constant 0 : i32
    %c0_i32_0 = arith.constant 0 : i32
    return %c0_i32, %arg0 : i32, i32
  }
}

</mosaic_0001>

<llo_original>
// kernel: policy_forward.1
$region0: #{policy_forward.1}
  #allocation0 [shape = 'u32[]', space=smem, size = 0x4, offset = 0x4, fixed_abs, tag = 'smem constant byte address 0x4 - core index']
  #allocation1 [shape = 'u32[144,128]{1,0:T(1,128)}', space=vmem, size = 0x12000, scoped, tag = 'internal scratch']
  %s0 = inlined_call_operand.vmem [shape: f32[5,128], index: 0, kind: input, shape index: {}]
  %s1 = inlined_call_operand.vmem [shape: f32[136,5], index: 1, kind: input, shape index: {}]
  %s2 = inlined_call_operand.vmem [shape: f32[3,136], index: 2, kind: input, shape index: {}]
  %s3 = inlined_call_operand.vmem [shape: f32[3,128], index: 3, kind: output, shape index: {}]
  %s4 = sld [smem:[#allocation0]]
  $region22: #{policy_forward.1} parent=0
    _
  %s6 = ssub.s32 1, %s4
  %s7 = scalar_select 0, %s6, %s4
  // Predicated region
  $region2: #{policy_forward.1} parent=0 // pred_check
    _
  $region3: #{policy_forward.1} parent=0 // pred_check_branch
    %9 = sbr.rel (0) target = $region5
  $region4: #{policy_forward.1} parent=0 // pred_region
    _
  $region5: #{policy_forward.1} parent=0 // pred_fallthru
    _
  // Predicated region
  $region6: #{policy_forward.1} parent=0 // pred_check
    _
  $region7: #{policy_forward.1} parent=0 // pred_check_branch
    %11 = sbr.rel (0) target = $region9
  $region8: #{policy_forward.1} parent=0 // pred_region
    _
  $region9: #{policy_forward.1} parent=0 // pred_fallthru
    _
  // Predicated region
  $region10: #{policy_forward.1} parent=0 // pred_check
    _
  $region11: #{policy_forward.1} parent=0 // pred_check_branch
    %13 = sbr.rel (0) target = $region13
  $region12: #{policy_forward.1} parent=0 // pred_region
    _
  $region13: #{policy_forward.1} parent=0 // pred_fallthru
    _
  %v14 = vld [vmem:[%s1] sm:$0xff]
  %v15 = vld [vmem:[%s1 + $0x8] sm:$0xff]
  %v16 = vld [vmem:[%s1 + $0x10] sm:$0xff]
  %v17 = vld [vmem:[%s1 + $0x18] sm:$0xff]
  %v18 = vld [vmem:[%s1 + $0x20] sm:$0xff]
  %v19 = vld [vmem:[%s1 + $0x28] sm:$0xff]
  %v20 = vld [vmem:[%s1 + $0x30] sm:$0xff]
  %v21 = vld [vmem:[%s1 + $0x38] sm:$0xff]
  %v22 = vld [vmem:[%s1 + $0x40] sm:$0xff]
  %v23 = vld [vmem:[%s1 + $0x48] sm:$0xff]
  %v24 = vld [vmem:[%s1 + $0x50] sm:$0xff]
  %v25 = vld [vmem:[%s1 + $0x58] sm:$0xff]
  %v26 = vld [vmem:[%s1 + $0x60] sm:$0xff]
  %v27 = vld [vmem:[%s1 + $0x68] sm:$0xff]
  %v28 = vld [vmem:[%s1 + $0x70] sm:$0xff]
  %v29 = vld [vmem:[%s1 + $0x78] sm:$0xff]
  %v30 = vld [vmem:[%s1 + $0x80] sm:$0xff]
  %v31 = vld [vmem:[%s0] sm:$0x1f]
  %vm32 = vcmask 39936
  %v34 = vsel %vm32, %v14, 0
  %v37 = vsel %vm32, %v15, 0
  %v40 = vsel %vm32, %v16, 0
  %v43 = vsel %vm32, %v17, 0
  %v46 = vsel %vm32, %v18, 0
  %v49 = vsel %vm32, %v19, 0
  %v52 = vsel %vm32, %v20, 0
  %v55 = vsel %vm32, %v21, 0
  %v58 = vsel %vm32, %v22, 0
  %v61 = vsel %vm32, %v23, 0
  %v64 = vsel %vm32, %v24, 0
  %v67 = vsel %vm32, %v25, 0
  %v70 = vsel %vm32, %v26, 0
  %v73 = vsel %vm32, %v27, 0
  %v76 = vsel %vm32, %v28, 0
  %v79 = vsel %vm32, %v29, 0
  %v82 = vsel %vm32, %v30, 0
  %vm84 = vcmask 1044480
  %v86 = vsel %vm84, %v31, 0
  %88 = vmatprep.subr.mxu0 0.0
  %89 = vmatpush1.msra.mxu0 %v86
  %90 = vmatprep.subr.mxu0 0.0
  %91 = vmatpush1.msra.mxu0 0.0
  %92 = vmatprep.subr.mxu0 0.0
  %93 = vmatpush1.msra.mxu0 0.0
  %94 = vmatprep.subr.mxu0 0.0
  %95 = vmatpush1.msra.mxu0 0.0
  %96 = vmatprep.subr.mxu0 0.0
  %97 = vmatpush1.msra.mxu0 0.0
  %98 = vmatprep.subr.mxu0 0.0
  %99 = vmatpush1.msra.mxu0 0.0
  %100 = vmatprep.subr.mxu0 0.0
  %101 = vmatpush1.msra.mxu0 0.0
  %102 = vmatprep.subr.mxu0 0.0
  %103 = vmatpush1.msra.mxu0 0.0
  %104 = vmatprep.subr.mxu0 0.0
  %105 = vmatpush1.msra.mxu0 0.0
  %106 = vmatprep.subr.mxu0 0.0
  %107 = vmatpush1.msra.mxu0 0.0
  %108 = vmatprep.subr.mxu0 0.0
  %109 = vmatpush1.msra.mxu0 0.0
  %110 = vmatprep.subr.mxu0 0.0
  %111 = vmatpush1.msra.mxu0 0.0
  %112 = vmatprep.subr.mxu0 0.0
  %113 = vmatpush1.msra.mxu0 0.0
  %114 = vmatprep.subr.mxu0 0.0
  %115 = vmatpush1.msra.mxu0 0.0
  %116 = vmatprep.subr.mxu0 0.0
  %117 = vmatpush1.msra.mxu0 0.0
  %118 = vmatprep.subr.mxu0 0.0
  %119 = vmatpush1.msra.mxu0 0.0
  %120 = vmatprep.subr.mxu0 0.0
  %121 = vmatpush1.msra.mxu0 0.0
  %122 = vmatprep.subr.mxu0 0.0
  %123 = vmatpush1.msra.mxu0 0.0
  %124 = vmatprep.subr.mxu0 0.0
  %125 = vmatpush1.msra.mxu0 0.0
  %126 = vmatprep.subr.mxu0 0.0
  %127 = vmatpush1.msra.mxu0 0.0
  %128 = vmatprep.subr.mxu0 0.0
  %129 = vmatpush1.msra.mxu0 0.0
  %130 = vmatprep.subr.mxu0 0.0
  %131 = vmatpush1.msra.mxu0 0.0
  %132 = vmatprep.subr.mxu0 0.0
  %133 = vmatpush1.msra.mxu0 0.0
  %134 = vmatprep.subr.mxu0 0.0
  %135 = vmatpush1.msra.mxu0 0.0
  %136 = vmatprep.subr.mxu0 0.0
  %137 = vmatpush1.msra.mxu0 0.0
  %138 = vmatprep.subr.mxu0 0.0
  %139 = vmatpush1.msra.mxu0 0.0
  %140 = vmatprep.subr.mxu0 0.0
  %141 = vmatpush1.msra.mxu0 0.0
  %142 = vmatprep.subr.mxu0 0.0
  %143 = vmatpush1.msra.mxu0 0.0
  %144 = vmatprep.subr.mxu0 0.0
  %145 = vmatpush1.msra.mxu0 0.0
  %146 = vmatprep.subr.mxu0 0.0
  %147 = vmatpush1.msra.mxu0 0.0
  %148 = vmatprep.subr.mxu0 0.0
  %149 = vmatpush1.msra.mxu0 0.0
  %150 = vmatprep.subr.mxu0 0.0
  %151 = vmatpush1.msra.mxu0 0.0
  %152 = vmatprep.mubr.f32.mxu0 0.0
  %153 = vmatmul.mubr.f32.gmra.mrb[0].mxu0 %v34
  %v154 = vpop.f32.mrb[0].mxu0
  %v155 = vadd.f32 0.0, %v154
  %v156 = vpop.f32.mrb[0].mxu0
  %157 = vmatprep.mubr.f32.mxu0 0.0
  %158 = vmatmul.mubr.f32.gmra.mrb[0].mxu0 %v37
  %v159 = vpop.f32.mrb[0].mxu0
  %v160 = vadd.f32 0.0, %v159
  %v161 = vpop.f32.mrb[0].mxu0
  %162 = vmatprep.mubr.f32.mxu0 0.0
  %163 = vmatmul.mubr.f32.gmra.mrb[0].mxu0 %v40
  %v164 = vpop.f32.mrb[0].mxu0
  %v165 = vadd.f32 0.0, %v164
  %v166 = vpop.f32.mrb[0].mxu0
  %167 = vmatprep.mubr.f32.mxu0 0.0
  %168 = vmatmul.mubr.f32.gmra.mrb[0].mxu0 %v43
  %v169 = vpop.f32.mrb[0].mxu0
  %v170 = vadd.f32 0.0, %v169
  %v171 = vpop.f32.mrb[0].mxu0
  %172 = vmatprep.mubr.f32.mxu0 0.0
  %173 = vmatmul.mubr.f32.gmra.mrb[0].mxu0 %v46
  %v174 = vpop.f32.mrb[0].mxu0
  %v175 = vadd.f32 0.0, %v174
  %v176 = vpop.f32.mrb[0].mxu0
  %177 = vmatprep.mubr.f32.mxu0 0.0
  %178 = vmatmul.mubr.f32.gmra.mrb[0].mxu0 %v49
  %v179 = vpop.f32.mrb[0].mxu0
  %v180 = vadd.f32 0.0, %v179
  %v181 = vpop.f32.mrb[0].mxu0
  %182 = vmatprep.mubr.f32.mxu0 0.0
  %183 = vmatmul.mubr.f32.gmra.mrb[0].mxu0 %v52
  %v184 = vpop.f32.mrb[0].mxu0
  %v185 = vadd.f32 0.0, %v184
  %v186 = vpop.f32.mrb[0].mxu0
  %187 = vmatprep.mubr.f32.mxu0 0.0
  %188 = vmatmul.mubr.f32.gmra.mrb[0].mxu0 %v55
  %v189 = vpop.f32.mrb[0].mxu0
  %v190 = vadd.f32 0.0, %v189
  %v191 = vpop.f32.mrb[0].mxu0
  %192 = vmatprep.mubr.f32.mxu0 0.0
  %193 = vmatmul.mubr.f32.gmra.mrb[0].mxu0 %v58
  %v194 = vpop.f32.mrb[0].mxu0
  %v195 = vadd.f32 0.0, %v194
  %v196 = vpop.f32.mrb[0].mxu0
  %197 = vmatprep.mubr.f32.mxu0 0.0
  %198 = vmatmul.mubr.f32.gmra.mrb[0].mxu0 %v61
  %v199 = vpop.f32.mrb[0].mxu0
  %v200 = vadd.f32 0.0, %v199
  %v201 = vpop.f32.mrb[0].mxu0
  %202 = vmatprep.mubr.f32.mxu0 0.0
  %203 = vmatmul.mubr.f32.gmra.mrb[0].mxu0 %v64
  %v204 = vpop.f32.mrb[0].mxu0
  %v205 = vadd.f32 0.0, %v204
  %v206 = vpop.f32.mrb[0].mxu0
  %207 = vmatprep.mubr.f32.mxu0 0.0
  %208 = vmatmul.mubr.f32.gmra.mrb[0].mxu0 %v67
  %v209 = vpop.f32.mrb[0].mxu0
  %v210 = vadd.f32 0.0, %v209
  %v211 = vpop.f32.mrb[0].mxu0
  %212 = vmatprep.mubr.f32.mxu0 0.0
  %213 = vmatmul.mubr.f32.gmra.mrb[0].mxu0 %v70
  %v214 = vpop.f32.mrb[0].mxu0
  %v215 = vadd.f32 0.0, %v214
  %v216 = vpop.f32.mrb[0].mxu0
  %217 = vmatprep.mubr.f32.mxu0 0.0
  %218 = vmatmul.mubr.f32.gmra.mrb[0].mxu0 %v73
  %v219 = vpop.f32.mrb[0].mxu0
  %v220 = vadd.f32 0.0, %v219
  %v221 = vpop.f32.mrb[0].mxu0
  %222 = vmatprep.mubr.f32.mxu0 0.0
  %223 = vmatmul.mubr.f32.gmra.mrb[0].mxu0 %v76
  %v224 = vpop.f32.mrb[0].mxu0
  %v225 = vadd.f32 0.0, %v224
  %v226 = vpop.f32.mrb[0].mxu0
  %227 = vmatprep.mubr.f32.mxu0 0.0
  %228 = vmatmul.mubr.f32.gmra.mrb[0].mxu0 %v79
  %v229 = vpop.f32.mrb[0].mxu0
  %v230 = vadd.f32 0.0, %v229
  %v231 = vpop.f32.mrb[0].mxu0
  %232 = vmatprep.mubr.f32.mxu0 0.0
  %233 = vmatmul.mubr.f32.gmra.mrb[0].mxu0 %v82
  %v234 = vpop.f32.mrb[0].mxu0
  %v235 = vadd.f32 0.0, %v234
  %v236 = vpop.f32.mrb[0].mxu0
  %237 = vdwg.mxu0
  %v238 = vmax.f32 %v155, 0.0
  %v239 = vmax.f32 %v160, 0.0
  %v240 = vmax.f32 %v165, 0.0
  %v241 = vmax.f32 %v170, 0.0
  %v242 = vmax.f32 %v175, 0.0
  %v243 = vmax.f32 %v180, 0.0
  %v244 = vmax.f32 %v185, 0.0
  %v245 = vmax.f32 %v190, 0.0
  %v246 = vmax.f32 %v195, 0.0
  %v247 = vmax.f32 %v200, 0.0
  %v248 = vmax.f32 %v205, 0.0
  %v249 = vmax.f32 %v210, 0.0
  %v250 = vmax.f32 %v215, 0.0
  %v251 = vmax.f32 %v220, 0.0
  %v252 = vmax.f32 %v225, 0.0
  %v253 = vmax.f32 %v230, 0.0
  %v254 = vmax.f32 %v235, 0.0
  %v255 = vld [vmem:[%s2] sm:$0x77]
  %v257 = vcombine.high %v255, %v255
  %vm258 = vcmask 64512
  %v259 = vsel %vm258, %v257, 0
  %261 = vmatprep.subr.mxu0 0.0
  %262 = vmatpush1.msra.mxu0 %v238
  %263 = vmatprep.subr.mxu0 0.0
  %264 = vmatpush1.msra.mxu0 %v239
  %265 = vmatprep.subr.mxu0 0.0
  %266 = vmatpush1.msra.mxu0 %v240
  %267 = vmatprep.subr.mxu0 0.0
  %268 = vmatpush1.msra.mxu0 %v241
  %269 = vmatprep.subr.mxu0 0.0
  %270 = vmatpush1.msra.mxu0 %v242
  %271 = vmatprep.subr.mxu0 0.0
  %272 = vmatpush1.msra.mxu0 %v243
  %273 = vmatprep.subr.mxu0 0.0
  %274 = vmatpush1.msra.mxu0 %v244
  %275 = vmatprep.subr.mxu0 0.0
  %276 = vmatpush1.msra.mxu0 %v245
  %277 = vmatprep.subr.mxu0 0.0
  %278 = vmatpush1.msra.mxu0 %v246
  %279 = vmatprep.subr.mxu0 0.0
  %280 = vmatpush1.msra.mxu0 %v247
  %281 = vmatprep.subr.mxu0 0.0
  %282 = vmatpush1.msra.mxu0 %v248
  %283 = vmatprep.subr.mxu0 0.0
  %284 = vmatpush1.msra.mxu0 %v249
  %285 = vmatprep.subr.mxu0 0.0
  %286 = vmatpush1.msra.mxu0 %v250
  %287 = vmatprep.subr.mxu0 0.0
  %288 = vmatpush1.msra.mxu0 %v251
  %289 = vmatprep.subr.mxu0 0.0
  %290 = vmatpush1.msra.mxu0 %v252
  %291 = vmatprep.subr.mxu0 0.0
  %292 = vmatpush1.msra.mxu0 %v253
  %293 = vmatprep.subr.mxu0 0.0
  %294 = vmatpush1.msra.mxu0 %v254
  %295 = vmatprep.subr.mxu0 0.0
  %296 = vmatpush1.msra.mxu0 0.0
  %297 = vmatprep.subr.mxu0 0.0
  %298 = vmatpush1.msra.mxu0 0.0
  %299 = vmatprep.subr.mxu0 0.0
  %300 = vmatpush1.msra.mxu0 0.0
  %301 = vmatprep.subr.mxu0 0.0
  %302 = vmatpush1.msra.mxu0 0.0
  %303 = vmatprep.subr.mxu0 0.0
  %304 = vmatpush1.msra.mxu0 0.0
  %305 = vmatprep.subr.mxu0 0.0
  %306 = vmatpush1.msra.mxu0 0.0
  %307 = vmatprep.subr.mxu0 0.0
  %308 = vmatpush1.msra.mxu0 0.0
  %309 = vmatprep.subr.mxu0 0.0
  %310 = vmatpush1.msra.mxu0 0.0
  %311 = vmatprep.subr.mxu0 0.0
  %312 = vmatpush1.msra.mxu0 0.0
  %313 = vmatprep.subr.mxu0 0.0
  %314 = vmatpush1.msra.mxu0 0.0
  %315 = vmatprep.subr.mxu0 0.0
  %316 = vmatpush1.msra.mxu0 0.0
  %317 = vmatprep.subr.mxu0 0.0
  %318 = vmatpush1.msra.mxu0 0.0
  %319 = vmatprep.subr.mxu0 0.0
  %320 = vmatpush1.msra.mxu0 0.0
  %321 = vmatprep.subr.mxu0 0.0
  %322 = vmatpush1.msra.mxu0 0.0
  %323 = vmatprep.subr.mxu0 0.0
  %324 = vmatpush1.msra.mxu0 0.0
  %325 = vmatprep.mubr.f32.mxu0 %v259
  %326 = vmatmul.mubr.f32.gmra.mrb[0].mxu0 %v255
  %v327 = vpop.f32.mrb[0].mxu0
  %v328 = vadd.f32 0.0, %v327
  %v329 = vpop.f32.mrb[0].mxu0
  %330 = vdwg.mxu0
  %v332 = vrot.slane %v328, 1
  %v334 = vmax.f32 %v328, %v332
  %v335 = vsub.f32 %v328, %v334
  %v336 = vmul.f32 %v335, 1.442695
  %v337 = vpow.pop %v336
  %v339 = vrot.slane %v334, 7
  %v341 = vsub.f32 %v328, %v339
  %v342 = vmul.f32 %v341, 1.442695
  %v343 = vpow.pop %v342
  %v345 = vrot.slane %v343, 1
  %v347 = vadd.f32 %v337, %v345
  %v348 = vrcp.pop %v347
  %v349 = vmul.f32 1.0, %v348
  %v350 = vmul.f32 %v337, %v349
  %351 = vst [vmem:[%s3] sm:$0x1] %v350
  %v353 = vrot.slane %v349, 7
  %v355 = vmul.f32 %v343, %v353
  %356 = vst [vmem:[%s3] sm:$0x2] %v355
  %357 = vst [vmem:[%s3] sm:$0x4] %v328
  // Predicated region
  $region14: #{policy_forward.1} parent=0 // pred_check
    _
  $region15: #{policy_forward.1} parent=0 // pred_check_branch
    %359 = sbr.rel (0) target = $region17
  $region16: #{policy_forward.1} parent=0 // pred_region
    _
  $region17: #{policy_forward.1} parent=0 // pred_fallthru
    _
  // Predicated region
  $region18: #{policy_forward.1} parent=0 // pred_check
    _
  $region19: #{policy_forward.1} parent=0 // pred_check_branch
    %361 = sbr.rel (0) target = $region21
  $region20: #{policy_forward.1} parent=0 // pred_region
    _
  $region21: #{policy_forward.1} parent=0 // pred_fallthru
    _

</llo_original>
